<compile_context>
chip_gen: v5e
topology: v5e:2x2
jax: 0.10.0
libtpu: 0.0.40
codegen_flags: <defaults>
</compile_context>

<pallas_src>
import jax
import jax.numpy as jnp
from jax.experimental import pallas as pl
from jax.experimental.pallas import tpu as pltpu


# ~2 MiB (int32) per block: lane-dense and comfortably inside the scoped-VMEM
# budget on v5e/v6e/v7x even with 4 live buffers (double-buffered in + out).
_LANE_TILE = 1024   # multiple of 128 -> unmasked full-width stores
_ROW_TILE = 512


def _copy_kernel(x_ref, o_ref):
    # Identity copy of one lane-dense tile (the ::1 slice of the original
    # module is a no-op, so no slicing / relayout happens in-kernel).
    o_ref[...] = x_ref[...]


def _pallas_identity_copy(x: jax.Array) -> jax.Array:
    """Physical copy of `x` through a lane-dense, pipelined Pallas kernel."""
    orig_shape = x.shape
    total = x.size

    block_elems = _ROW_TILE * _LANE_TILE
    if total <= block_elems:
        # Tiny input: a single block, padded up to the minimal (8, 128) tiling
        # (128 lanes is already a full, unmasked vreg width).
        lane = 128
        rows = pl.cdiv(pl.cdiv(total, lane), 8) * 8
        row_tile = rows
    else:
        lane = _LANE_TILE
        row_tile = _ROW_TILE
        rows = pl.cdiv(total, block_elems) * block_elems // lane

    padded = rows * lane
    flat = x.reshape(-1)
    if padded != total:
        flat = jnp.pad(flat, (0, padded - total))
    x2d = flat.reshape(rows, lane)

    out2d = pl.pallas_call(
        _copy_kernel,
        out_shape=jax.ShapeDtypeStruct((rows, lane), x.dtype),
        grid_spec=pltpu.PrefetchScalarGridSpec(
            num_scalar_prefetch=0,
            grid=(rows // row_tile,),
            in_specs=[pl.BlockSpec((row_tile, lane), lambda i: (i, 0))],
            out_specs=pl.BlockSpec((row_tile, lane), lambda i: (i, 0)),
        ),
        # Output aliases the (freshly materialized, donatable) flattened/padded
        # input, so no extra HBM allocation is made for the result.
        input_output_aliases={0: 0},
        compiler_params=pltpu.CompilerParams(
            dimension_semantics=("parallel",),   # shard grid across TCs (v7x)
            vmem_limit_bytes=32 << 20,
        ),
    )(x2d)

    return out2d.reshape(-1)[:total].reshape(orig_shape)


def dense_dilated(edge_idx: jax.Array, *, force_copy: bool = False) -> jax.Array:
    """DenseDilated.forward: edge_idx[:, :, :, ::1] on a (2, B, N, k) tensor.

    The stride-1 slice is an exact identity, so by default this returns the
    input unchanged (the cheapest possible lowering).  `force_copy=True`
    routes through the lane-dense Pallas copy kernel instead.
    """
    assert edge_idx.ndim == 4, "edge_index must be (2, batch, num_points, k)"
    assert edge_idx.shape[0] == 2, "edge_index first dim must be 2 (src/dst)"
    # TODO(synk): general DenseDilated (dilation>1 / stochastic sampling) would
    # need a strided/gathered last-axis selection; this module only uses ::1.

    if not force_copy:
        return edge_idx
    return _pallas_identity_copy(edge_idx)


if __name__ == "__main__":
    key = jax.random.PRNGKey(0)
    batch, num_points, k = 2, 16, 8

    # Synthetic neighbor list: (2, batch, num_points, k) integer indices.
    edge_idx = jax.random.randint(
        key, shape=(2, batch, num_points, k), minval=0, maxval=num_points,
        dtype=jnp.int32,
    )

    # Reference: the PyTorch forward is an identity stride-1 slice.
    ref = edge_idx[:, :, :, ::1]

    # Fast path (default): zero-copy identity.
    fast = dense_dilated(edge_idx)
    fast = jax.block_until_ready(fast)
    assert fast.shape == ref.shape and fast.dtype == ref.dtype
    assert bool(jnp.all(fast == ref))

    # Pallas kernel path: lane-dense pipelined copy.
    out = dense_dilated(edge_idx, force_copy=True)
    out = jax.block_until_ready(out)
    assert out.shape == ref.shape and out.dtype == ref.dtype
    assert bool(jnp.all(out == ref))

    print("KERNEL_OK")
</pallas_src>

<mosaic_0001>
module attributes {stable_mosaic.version = 11 : i64} {
  func.func @_copy_kernel(%arg0: i32, %arg1: memref<8x128xi32, #tpu.memory_space<vmem>>, %arg2: memref<8x128xi32, #tpu.memory_space<vmem>>) attributes {dimension_semantics = [#tpu.dimension_semantics<parallel>], iteration_bounds = array<i64: 1>, scalar_prefetch = 0 : i64, scratch_operands = 0 : i64, tpu.core_type = #tpu.core_type<tc>, window_params = [{transform_indices = @transform_0, window_bounds = array<i64: 8, 128>}, {transform_indices = @transform_1, window_bounds = array<i64: 8, 128>}]} {
    %c0 = arith.constant 0 : index
    %c0_0 = arith.constant 0 : index
    %0 = vector.load %arg1[%c0, %c0_0] : memref<8x128xi32, #tpu.memory_space<vmem>>, vector<8x128xi32>
    %c0_1 = arith.constant 0 : index
    %c0_2 = arith.constant 0 : index
    %1 = vector.load %arg2[%c0_1, %c0_2] : memref<8x128xi32, #tpu.memory_space<vmem>>, vector<8x128xi32>
    tpu.vector_store %arg2[%c0_1, %c0_2], %0 {strides = array<i32>} : memref<8x128xi32, #tpu.memory_space<vmem>>, vector<8x128xi32>,
    return
  }
  func.func @transform_0(%arg0: i32) -> (i32, i32) {
    %c0_i32 = arith.constant 0 : i32
    %c0_i32_0 = arith.constant 0 : i32
    return %arg0, %c0_i32 : i32, i32
  }
  func.func @transform_1(%arg0: i32) -> (i32, i32) {
    %c0_i32 = arith.constant 0 : i32
    %c0_i32_0 = arith.constant 0 : i32
    return %arg0, %c0_i32 : i32, i32
  }
}

</mosaic_0001>

<llo_original>
// kernel: tpu_custom_call.1
$region0: #{tpu_custom_call.1}
  #allocation0 [shape = 'u32[]', space=smem, size = 0x4, offset = 0x4, fixed_abs, tag = 'smem constant byte address 0x4 - core index']
  #allocation1 [shape = 'u32[72,128]{1,0:T(1,128)}', space=vmem, size = 0x9000, scoped, tag = 'internal scratch']
  %s0 = inlined_call_operand.hbm [shape: s32[8,128], index: 0, kind: input, shape index: {}, may-alias: {0,1}]
  %s1 = inlined_call_operand.hbm [shape: s32[8,128], index: 1, kind: output, shape index: {}, may-alias: {0,1}]
  %s2 = sld [smem:[#allocation0]]
  $region18: #{tpu_custom_call.1} parent=0
    _
  %s4 = ssub.s32 1, %s2
  %s5 = scalar_select 0, %s4, %s2
  $region1: #{tpu_custom_call.1} parent=0
    #allocation2 [shape = 'u8[4096]{0}', space=vmem, size = 0x1000, scoped, tag = 'input window, operand 0, single buffered']
    #allocation3 [shape = 's32[1]{0}', space=sflag, size = 0x4, scoped, tag = 'scoped memory for tpu_custom_call.1']
    #allocation4 [shape = 's32[1]{0}', space=sflag, size = 0x4, scoped, tag = 'scoped memory for tpu_custom_call.1']
    #allocation5 [shape = 'u8[4096]{0}', space=vmem, size = 0x1000, scoped, tag = 'output window, operand 0, single buffered']
    %6 = vsyncpa [#allocation3], 0
    %7 = vsyncpa [#allocation4], 0
    // Predicated region
    $region2: #{tpu_custom_call.1} parent=1 // pred_check
      _
    $region3: #{tpu_custom_call.1} parent=1 // pred_check_branch
      %9 = sbr.rel (0) target = $region5
    $region4: #{tpu_custom_call.1} parent=1 // pred_region
      %11 = vsyncadd [#allocation3], 0
      %s13 = sshll.u32 %s0, 4
      %s14 = int_to_ptr.hbm [resolvable:$true] %s13
      %s15 = sshll.u32 [#allocation2], 4
      %s16 = int_to_ptr.vmem [resolvable:$true] %s15
      %18 = dma.hbm_to_vmem [thread:$0]  %s14, 128, %s16, [#allocation3]
    $region5: #{tpu_custom_call.1} parent=1 // pred_fallthru
      _
    // Predicated region
    $region6: #{tpu_custom_call.1} parent=1 // pred_check
      _
    $region7: #{tpu_custom_call.1} parent=1 // pred_check_branch
      %20 = sbr.rel (0) target = $region9
    $region8: #{tpu_custom_call.1} parent=1 // pred_region
      %22 = dma.done [#allocation3], 128
    $region9: #{tpu_custom_call.1} parent=1 // pred_fallthru
      _
    %v23 = vld [vmem:[#allocation2] sm:$0xff]
    %24 = vst [vmem:[#allocation5] sm:$0xff] %v23
    // Predicated region
    $region10: #{tpu_custom_call.1} parent=1 // pred_check
      _
    $region11: #{tpu_custom_call.1} parent=1 // pred_check_branch
      %26 = sbr.rel (0) target = $region13
    $region12: #{tpu_custom_call.1} parent=1 // pred_region
      %28 = vsyncadd [#allocation4], 0
      %s30 = sshll.u32 [#allocation5], 4
      %s31 = int_to_ptr.vmem [resolvable:$true] %s30
      %s32 = sshll.u32 %s1, 4
      %s33 = int_to_ptr.hbm [resolvable:$true] %s32
      %35 = dma.vmem_to_hbm [thread:$0]  %s31, 128, %s33, [#allocation4]
    $region13: #{tpu_custom_call.1} parent=1 // pred_fallthru
      _
    // Predicated region
    $region14: #{tpu_custom_call.1} parent=1 // pred_check
      _
    $region15: #{tpu_custom_call.1} parent=1 // pred_check_branch
      %37 = sbr.rel (0) target = $region17
    $region16: #{tpu_custom_call.1} parent=1 // pred_region
      %39 = dma.done [#allocation4], 128
    $region17: #{tpu_custom_call.1} parent=1 // pred_fallthru
      _
    %40 = vsyncpa [#allocation3], 1
    %41 = vsyncpa [#allocation4], 1

</llo_original>
